<compile_context>
chip_gen: v7x
topology: tpu7x:2x2x1
jax: 0.10.0
libtpu: 0.0.40
codegen_flags: <defaults>
</compile_context>

<pallas_src>
import functools
import math

import jax
import jax.numpy as jnp
from jax.experimental import pallas as pl
from jax.experimental.pallas import tpu as pltpu

LEAKY_SLOPE = 0.01   # nn.LeakyReLU default negative_slope
LANE = 128           # TPU lane width
NEG_BIG = -1e30      # bias for padded action columns -> exp underflows to 0
SUBLANE = 16         # bf16 packs 16 sublanes per vreg
MIN_TILE = 256       # batch-tile floor for the gridded path (fill the MXU M-dim)
MAX_TILE = 2048


def _round_up(x, m):
    return ((x + m - 1) // m) * m


def _device_kind():
    try:
        return jax.devices()[0].device_kind.lower()
    except Exception:
        return ""


def actor_mlp_kernel(
    x_ref,
    w1_ref, b1_ref,
    w2_ref, b2_ref,
    w3_ref, b3_ref,
    w4_ref, b4_ref,
    w5_ref, b5_ref,
    w6_ref, b6_ref,
    out_ref,
    *, act_dtype,
):
    """One batch tile of the full MLP + softmax, entirely VMEM-resident.

    x arrives as bf16 (no layer-1 cast); hidden bias-add + LeakyReLU run in
    `act_dtype` (bf16 on v6e/v7x, f32 on older chips); every matmul is
    bf16 x bf16 -> f32 on the MXU; logits and softmax stay f32.
    """

    def hidden(h_bf16, w_ref, b_ref):
        acc = jnp.dot(h_bf16, w_ref[...], preferred_element_type=jnp.float32)
        a = acc.astype(act_dtype) + b_ref[...]
        a = jnp.where(a > 0, a, LEAKY_SLOPE * a)
        return a.astype(jnp.bfloat16)          # no-op when act_dtype is bf16

    h = x_ref[...]                             # bf16 [tile, Din_pad]
    h = hidden(h, w1_ref, b1_ref)
    h = hidden(h, w2_ref, b2_ref)
    h = hidden(h, w3_ref, b3_ref)
    h = hidden(h, w4_ref, b4_ref)
    h = hidden(h, w5_ref, b5_ref)

    logits = jnp.dot(h, w6_ref[...],
                     preferred_element_type=jnp.float32) + b6_ref[...]   # f32

    # Numerically-stable softmax over the padded (lane-dense) action axis.
    # Padded columns carry a -1e30 bias -> exp underflows to exactly 0.
    m = jnp.max(logits, axis=-1, keepdims=True)
    e = jnp.exp(logits - m)
    denom = jnp.sum(e, axis=-1, keepdims=True)
    # Exact divide so rows sum to 1 (PPO log-prob / entropy safe); the divide
    # hides under the MXU work.
    out_ref[...] = (e / denom).astype(out_ref.dtype)


def _prepare_actor_params(params, input_dims, act_dtype):
    """Zero-pad every layer width to 128 lanes; weights -> bf16; hidden biases ->
    act_dtype; final bias f32 with -1e30 on padded action columns.  Zeros
    propagate exactly through Linear+LeakyReLU, so padding is numerically inert.
    """
    dims = [input_dims] + [w.shape[1] for w, _ in params]
    pdims = [_round_up(d, LANE) for d in dims]

    flat = []
    n_layers = len(params)
    for li, (w, b) in enumerate(params):
        din, dout = w.shape
        pin, pout = pdims[li], pdims[li + 1]
        w_p = (jnp.zeros((pin, pout), jnp.float32)
               .at[:din, :dout].set(w.astype(jnp.float32))
               .astype(jnp.bfloat16))
        b_row = b.reshape(1, -1).astype(jnp.float32)
        if li == n_layers - 1:
            b_p = jnp.full((1, pout), NEG_BIG, jnp.float32).at[:, :dout].set(b_row)
        else:
            b_p = (jnp.zeros((1, pout), jnp.float32)
                   .at[:, :dout].set(b_row)
                   .astype(act_dtype))
        flat.extend([w_p, b_p])
    return tuple(flat), pdims


def make_actor_forward(params, input_dims, *, batch_tile=1024):
    """Pad/cast the weights ONCE and return a jitted forward closure.

    Returned fn: state [batch, input_dims] f32 -> probs [batch, n_actions] f32
    (the probability matrix behind the Categorical in ActorNetwork.forward()).
    """
    kind = _device_kind()
    bf16_elementwise = ("v6" in kind) or ("v7" in kind)   # v5e/older: no bf16 VPU
    act_dtype = jnp.bfloat16 if bf16_elementwise else jnp.float32
    core_parallel = "v7" in kind                          # 2 TensorCores / chip

    flat_params, pdims = _prepare_actor_params(params, input_dims, act_dtype)
    n_actions = params[-1][0].shape[1]
    din_p, a_p = pdims[0], pdims[-1]
    max_hidden_p = max(pdims)

    kernel = functools.partial(actor_mlp_kernel, act_dtype=act_dtype)

    def _forward(state, *flat):
        batch = state.shape[0]
        b16 = _round_up(batch, SUBLANE)

        # Tile sizing: floor of MIN_TILE rows so the MXU M-dimension is filled;
        # batches that fit in one tile take the no-grid latency path.
        tile = _round_up(min(max(batch_tile, MIN_TILE), MAX_TILE), SUBLANE)
        if b16 <= tile:
            tile, num_tiles = b16, 1
        else:
            num_tiles = (b16 + tile - 1) // tile
        bp = tile * num_tiles

        # Lane-dense bf16 state slab: halves the dominant streamed input DMA and
        # removes the per-element f32->bf16 cast in layer 1.
        x = (jnp.zeros((bp, din_p), jnp.bfloat16)
             .at[:batch, :input_dims].set(state.astype(jnp.bfloat16)))

        flops = 2 * bp * sum(pdims[i] * pdims[i + 1] for i in range(len(pdims) - 1))
        weight_bytes = sum(int(p.size) * p.dtype.itemsize for p in flat)
        io_bytes = int(x.size) * 2 + bp * a_p * 4
        cost = pl.CostEstimate(flops=int(flops), transcendentals=int(bp * a_p),
                               bytes_accessed=int(weight_bytes + io_bytes))

        out_shape = jax.ShapeDtypeStruct((bp, a_p), jnp.float32)

        if num_tiles == 1:
            # Latency path: single invocation, no grid/pipeline machinery;
            # every operand is one whole-array VMEM block.
            probs_p = pl.pallas_call(
                kernel,
                out_shape=out_shape,
                in_specs=[pl.BlockSpec(memory_space=pltpu.MemorySpace.VMEM)]
                         * (1 + len(flat)),
                out_specs=pl.BlockSpec(memory_space=pltpu.MemorySpace.VMEM),
                cost_estimate=cost,
            )(x, *flat)
        else:
            # Throughput path: pipeline over >=256-row batch tiles; weights use a
            # constant index_map (resident across the grid).
            def const_spec(arr):
                nd = arr.ndim
                return pl.BlockSpec(arr.shape, lambda i, _nd=nd: (0,) * _nd)

            in_specs = ([pl.BlockSpec((tile, din_p), lambda i: (i, 0))]
                        + [const_spec(p) for p in flat])
            out_spec = pl.BlockSpec((tile, a_p), lambda i: (i, 0))

            # Raise the scoped VMEM limit only if huge tiles actually need it
            # (v5e's scoped default is 16 MiB).
            est = (2 * weight_bytes                     # resident weights, 2 bufs
                   + 2 * tile * din_p * 2               # x bf16, double-buffered
                   + 2 * tile * a_p * 4                 # out f32, double-buffered
                   + 4 * tile * max_hidden_p * 4)       # live intermediates, headroom
            vmem_limit = None
            if est > (12 << 20):
                vmem_limit = min(max(2 * est, 32 << 20), 64 << 20)

            sem = (pltpu.CORE_PARALLEL if core_parallel else pltpu.PARALLEL,)
            probs_p = pl.pallas_call(
                kernel,
                out_shape=out_shape,
                grid=(num_tiles,),
                in_specs=in_specs,
                out_specs=out_spec,
                compiler_params=pltpu.CompilerParams(
                    dimension_semantics=sem,
                    vmem_limit_bytes=vmem_limit),
                cost_estimate=cost,
            )(x, *flat)

        # Strip batch padding and the padded (zero-probability) action columns.
        return probs_p[:batch, :n_actions]

    jitted = jax.jit(_forward)

    def forward(state):
        return jitted(state, *flat_params)

    return forward


def actor_forward_ref(state, params):
    """Pure-JAX f32 reference (matches the PyTorch module numerically)."""
    h = state
    n_layers = len(params)
    for i, (w, b) in enumerate(params):
        h = h @ w + b
        if i < n_layers - 1:
            h = jnp.where(h > 0, h, LEAKY_SLOPE * h)
    return jax.nn.softmax(h, axis=-1)


def init_actor_params(key, input_dims, n_actions,
                      fc1_dims=80, fc2_dims=256, fc3_dims=160, fc4_dims=40):
    """Deterministic synthetic init matching PyTorch Linear default ranges."""
    layer_dims = [
        (input_dims, fc1_dims),
        (fc1_dims, fc2_dims),
        (fc2_dims, fc3_dims),
        (fc3_dims, fc4_dims),
        (fc4_dims, fc1_dims),
        (fc1_dims, n_actions),
    ]
    params = []
    for (fan_in, fan_out) in layer_dims:
        key, kw, kb = jax.random.split(key, 3)
        bound = 1.0 / math.sqrt(fan_in)
        w = jax.random.uniform(kw, (fan_in, fan_out), jnp.float32, -bound, bound)
        b = jax.random.uniform(kb, (1, fan_out), jnp.float32, -bound, bound)
        params.append((w, b))
    return params


if __name__ == "__main__":
    key = jax.random.PRNGKey(0)
    key, k_state = jax.random.split(key)

    batch = 2
    input_dims = 32
    n_actions = 8

    params = init_actor_params(key, input_dims, n_actions)
    # Weight padding / bf16 cast happens once here, not per forward call.
    actor_forward = make_actor_forward(params, input_dims, batch_tile=512)

    # --- Small-batch / latency path (no grid, whole-VMEM blocks) -------------
    state_small = jax.random.normal(k_state, (batch, input_dims), jnp.float32)
    probs_small = jax.block_until_ready(actor_forward(state_small))
    ref_small = actor_forward_ref(state_small, params)

    assert probs_small.shape == (batch, n_actions)
    assert bool(jnp.all(probs_small >= 0.0))
    # exact softmax divide -> rows sum to 1 to float rounding
    assert bool(jnp.all(jnp.abs(jnp.sum(probs_small, axis=-1) - 1.0) < 1e-3))
    # bf16 weights (+ bf16 activations on v6e/v7x) -> loosened abs tolerance
    assert bool(jnp.max(jnp.abs(probs_small - ref_small)) < 5e-2)

    # --- Batched / pipelined path (grid over >=256-row tiles) ----------------
    key, k_big = jax.random.split(key)
    big_batch = 1200          # -> 3 grid steps of 512 rows (last one padded)
    state_big = jax.random.normal(k_big, (big_batch, input_dims), jnp.float32)
    probs_big = jax.block_until_ready(actor_forward(state_big))
    ref_big = actor_forward_ref(state_big, params)

    assert probs_big.shape == (big_batch, n_actions)
    assert bool(jnp.all(probs_big >= 0.0))
    assert bool(jnp.all(jnp.abs(jnp.sum(probs_big, axis=-1) - 1.0) < 1e-3))
    assert bool(jnp.max(jnp.abs(probs_big - ref_big)) < 5e-2)

    print("KERNEL_OK")
</pallas_src>

<mosaic_0001>
module attributes {stable_mosaic.version = 11 : i64} {
  func.func @actor_mlp_kernel(%arg0: memref<16x128xbf16, #tpu.memory_space<vmem>>, %arg1: memref<128x128xbf16, #tpu.memory_space<vmem>>, %arg2: memref<1x128xf32, #tpu.memory_space<vmem>>, %arg3: memref<128x256xbf16, #tpu.memory_space<vmem>>, %arg4: memref<1x256xf32, #tpu.memory_space<vmem>>, %arg5: memref<256x256xbf16, #tpu.memory_space<vmem>>, %arg6: memref<1x256xf32, #tpu.memory_space<vmem>>, %arg7: memref<256x128xbf16, #tpu.memory_space<vmem>>, %arg8: memref<1x128xf32, #tpu.memory_space<vmem>>, %arg9: memref<128x128xbf16, #tpu.memory_space<vmem>>, %arg10: memref<1x128xf32, #tpu.memory_space<vmem>>, %arg11: memref<128x128xbf16, #tpu.memory_space<vmem>>, %arg12: memref<1x128xf32, #tpu.memory_space<vmem>>, %arg13: memref<16x128xf32, #tpu.memory_space<vmem>>) attributes {dimension_semantics = [], scalar_prefetch = 0 : i64, scratch_operands = 0 : i64, tpu.core_type = #tpu.core_type<tc>} {
    %c0 = arith.constant 0 : index
    %c0_0 = arith.constant 0 : index
    %0 = vector.load %arg0[%c0, %c0_0] : memref<16x128xbf16, #tpu.memory_space<vmem>>, vector<16x128xbf16>
    %c0_1 = arith.constant 0 : index
    %c0_2 = arith.constant 0 : index
    %1 = vector.load %arg1[%c0_1, %c0_2] : memref<128x128xbf16, #tpu.memory_space<vmem>>, vector<128x128xbf16>
    %cst = arith.constant dense<0.000000e+00> : vector<16x128xf32>
    %2 = tpu.matmul %0, %1, %cst {dimension_numbers = #tpu.dot_dimension_numbers<[1], [0], [0], [1], [0, 0, 1, 1], [], []>} : vector<16x128xbf16>, vector<128x128xbf16>, vector<16x128xf32> -> vector<16x128xf32>
    %c0_3 = arith.constant 0 : index
    %c0_4 = arith.constant 0 : index
    %3 = vector.load %arg2[%c0_3, %c0_4] : memref<1x128xf32, #tpu.memory_space<vmem>>, vector<1x128xf32>
    %4 = vector.broadcast %3 : vector<1x128xf32> to vector<16x128xf32>
    %5 = arith.addf %2, %4 : vector<16x128xf32>
    %cst_5 = arith.constant 0.000000e+00 : f32
    %6 = vector.broadcast %cst_5 : f32 to vector<16x128xf32>
    %7 = arith.cmpf ogt, %5, %6 : vector<16x128xf32>
    %cst_6 = arith.constant 0.00999999977 : f32
    %8 = vector.broadcast %cst_6 : f32 to vector<16x128xf32>
    %9 = arith.mulf %8, %5 : vector<16x128xf32>
    %10 = arith.select %7, %5, %9 : vector<16x128xi1>, vector<16x128xf32>
    %11 = arith.truncf %10 : vector<16x128xf32> to vector<16x128xbf16>
    %c0_7 = arith.constant 0 : index
    %c0_8 = arith.constant 0 : index
    %12 = vector.load %arg3[%c0_7, %c0_8] : memref<128x256xbf16, #tpu.memory_space<vmem>>, vector<128x256xbf16>
    %cst_9 = arith.constant dense<0.000000e+00> : vector<16x256xf32>
    %13 = tpu.matmul %11, %12, %cst_9 {dimension_numbers = #tpu.dot_dimension_numbers<[1], [0], [0], [1], [0, 0, 1, 1], [], []>} : vector<16x128xbf16>, vector<128x256xbf16>, vector<16x256xf32> -> vector<16x256xf32>
    %c0_10 = arith.constant 0 : index
    %c0_11 = arith.constant 0 : index
    %14 = vector.load %arg4[%c0_10, %c0_11] : memref<1x256xf32, #tpu.memory_space<vmem>>, vector<1x256xf32>
    %15 = vector.broadcast %14 : vector<1x256xf32> to vector<16x256xf32>
    %16 = arith.addf %13, %15 : vector<16x256xf32>
    %cst_12 = arith.constant 0.000000e+00 : f32
    %17 = vector.broadcast %cst_12 : f32 to vector<16x256xf32>
    %18 = arith.cmpf ogt, %16, %17 : vector<16x256xf32>
    %cst_13 = arith.constant 0.00999999977 : f32
    %19 = vector.broadcast %cst_13 : f32 to vector<16x256xf32>
    %20 = arith.mulf %19, %16 : vector<16x256xf32>
    %21 = arith.select %18, %16, %20 : vector<16x256xi1>, vector<16x256xf32>
    %22 = arith.truncf %21 : vector<16x256xf32> to vector<16x256xbf16>
    %c0_14 = arith.constant 0 : index
    %c0_15 = arith.constant 0 : index
    %23 = vector.load %arg5[%c0_14, %c0_15] : memref<256x256xbf16, #tpu.memory_space<vmem>>, vector<256x256xbf16>
    %cst_16 = arith.constant dense<0.000000e+00> : vector<16x256xf32>
    %24 = tpu.matmul %22, %23, %cst_16 {dimension_numbers = #tpu.dot_dimension_numbers<[1], [0], [0], [1], [0, 0, 1, 1], [], []>} : vector<16x256xbf16>, vector<256x256xbf16>, vector<16x256xf32> -> vector<16x256xf32>
    %c0_17 = arith.constant 0 : index
    %c0_18 = arith.constant 0 : index
    %25 = vector.load %arg6[%c0_17, %c0_18] : memref<1x256xf32, #tpu.memory_space<vmem>>, vector<1x256xf32>
    %26 = vector.broadcast %25 : vector<1x256xf32> to vector<16x256xf32>
    %27 = arith.addf %24, %26 : vector<16x256xf32>
    %cst_19 = arith.constant 0.000000e+00 : f32
    %28 = vector.broadcast %cst_19 : f32 to vector<16x256xf32>
    %29 = arith.cmpf ogt, %27, %28 : vector<16x256xf32>
    %cst_20 = arith.constant 0.00999999977 : f32
    %30 = vector.broadcast %cst_20 : f32 to vector<16x256xf32>
    %31 = arith.mulf %30, %27 : vector<16x256xf32>
    %32 = arith.select %29, %27, %31 : vector<16x256xi1>, vector<16x256xf32>
    %33 = arith.truncf %32 : vector<16x256xf32> to vector<16x256xbf16>
    %c0_21 = arith.constant 0 : index
    %c0_22 = arith.constant 0 : index
    %34 = vector.load %arg7[%c0_21, %c0_22] : memref<256x128xbf16, #tpu.memory_space<vmem>>, vector<256x128xbf16>
    %cst_23 = arith.constant dense<0.000000e+00> : vector<16x128xf32>
    %35 = tpu.matmul %33, %34, %cst_23 {dimension_numbers = #tpu.dot_dimension_numbers<[1], [0], [0], [1], [0, 0, 1, 1], [], []>} : vector<16x256xbf16>, vector<256x128xbf16>, vector<16x128xf32> -> vector<16x128xf32>
    %c0_24 = arith.constant 0 : index
    %c0_25 = arith.constant 0 : index
    %36 = vector.load %arg8[%c0_24, %c0_25] : memref<1x128xf32, #tpu.memory_space<vmem>>, vector<1x128xf32>
    %37 = vector.broadcast %36 : vector<1x128xf32> to vector<16x128xf32>
    %38 = arith.addf %35, %37 : vector<16x128xf32>
    %cst_26 = arith.constant 0.000000e+00 : f32
    %39 = vector.broadcast %cst_26 : f32 to vector<16x128xf32>
    %40 = arith.cmpf ogt, %38, %39 : vector<16x128xf32>
    %cst_27 = arith.constant 0.00999999977 : f32
    %41 = vector.broadcast %cst_27 : f32 to vector<16x128xf32>
    %42 = arith.mulf %41, %38 : vector<16x128xf32>
    %43 = arith.select %40, %38, %42 : vector<16x128xi1>, vector<16x128xf32>
    %44 = arith.truncf %43 : vector<16x128xf32> to vector<16x128xbf16>
    %c0_28 = arith.constant 0 : index
    %c0_29 = arith.constant 0 : index
    %45 = vector.load %arg9[%c0_28, %c0_29] : memref<128x128xbf16, #tpu.memory_space<vmem>>, vector<128x128xbf16>
    %cst_30 = arith.constant dense<0.000000e+00> : vector<16x128xf32>
    %46 = tpu.matmul %44, %45, %cst_30 {dimension_numbers = #tpu.dot_dimension_numbers<[1], [0], [0], [1], [0, 0, 1, 1], [], []>} : vector<16x128xbf16>, vector<128x128xbf16>, vector<16x128xf32> -> vector<16x128xf32>
    %c0_31 = arith.constant 0 : index
    %c0_32 = arith.constant 0 : index
    %47 = vector.load %arg10[%c0_31, %c0_32] : memref<1x128xf32, #tpu.memory_space<vmem>>, vector<1x128xf32>
    %48 = vector.broadcast %47 : vector<1x128xf32> to vector<16x128xf32>
    %49 = arith.addf %46, %48 : vector<16x128xf32>
    %cst_33 = arith.constant 0.000000e+00 : f32
    %50 = vector.broadcast %cst_33 : f32 to vector<16x128xf32>
    %51 = arith.cmpf ogt, %49, %50 : vector<16x128xf32>
    %cst_34 = arith.constant 0.00999999977 : f32
    %52 = vector.broadcast %cst_34 : f32 to vector<16x128xf32>
    %53 = arith.mulf %52, %49 : vector<16x128xf32>
    %54 = arith.select %51, %49, %53 : vector<16x128xi1>, vector<16x128xf32>
    %55 = arith.truncf %54 : vector<16x128xf32> to vector<16x128xbf16>
    %c0_35 = arith.constant 0 : index
    %c0_36 = arith.constant 0 : index
    %56 = vector.load %arg11[%c0_35, %c0_36] : memref<128x128xbf16, #tpu.memory_space<vmem>>, vector<128x128xbf16>
    %cst_37 = arith.constant dense<0.000000e+00> : vector<16x128xf32>
    %57 = tpu.matmul %55, %56, %cst_37 {dimension_numbers = #tpu.dot_dimension_numbers<[1], [0], [0], [1], [0, 0, 1, 1], [], []>} : vector<16x128xbf16>, vector<128x128xbf16>, vector<16x128xf32> -> vector<16x128xf32>
    %c0_38 = arith.constant 0 : index
    %c0_39 = arith.constant 0 : index
    %58 = vector.load %arg12[%c0_38, %c0_39] : memref<1x128xf32, #tpu.memory_space<vmem>>, vector<1x128xf32>
    %59 = vector.broadcast %58 : vector<1x128xf32> to vector<16x128xf32>
    %60 = arith.addf %57, %59 : vector<16x128xf32>
    %cst_40 = arith.constant dense<0xFF800000> : vector<16xf32>
    %61 = vector.multi_reduction <maximumf>, %60, %cst_40 [1] : vector<16x128xf32> to vector<16xf32>
    %62 = vector.shape_cast %61 : vector<16xf32> to vector<16x1xf32>
    %63 = vector.broadcast %62 : vector<16x1xf32> to vector<16x128xf32>
    %64 = arith.subf %60, %63 : vector<16x128xf32>
    %65 = math.exp %64 : vector<16x128xf32>
    %cst_41 = arith.constant dense<0.000000e+00> : vector<16xf32>
    %66 = vector.multi_reduction <add>, %65, %cst_41 [1] : vector<16x128xf32> to vector<16xf32>
    %67 = vector.shape_cast %66 : vector<16xf32> to vector<16x1xf32>
    %68 = vector.broadcast %67 : vector<16x1xf32> to vector<16x128xf32>
    %69 = arith.divf %65, %68 : vector<16x128xf32>
    %c0_42 = arith.constant 0 : index
    %c0_43 = arith.constant 0 : index
    %70 = vector.load %arg13[%c0_42, %c0_43] : memref<16x128xf32, #tpu.memory_space<vmem>>, vector<16x128xf32>
    tpu.vector_store %arg13[%c0_42, %c0_43], %69 {strides = array<i32>} : memref<16x128xf32, #tpu.memory_space<vmem>>, vector<16x128xf32>,
    return
  }
}

</mosaic_0001>

<llo_original>
// kernel: _forward.1
$region0: #{_forward.1}
  #allocation0 [shape = 'u32[]', space=smem, size = 0x4, offset = 0x4, fixed_abs, tag = 'smem constant byte address 0x4 - core index']
  #allocation1 [shape = 'u32[144,128]{1,0:T(1,128)}', space=vmem, size = 0x12000, scoped, tag = 'internal scratch']
  %s0 = inlined_call_operand.vmem [shape: bf16[16,128], index: 0, kind: input, shape index: {}]
  %s1 = inlined_call_operand.hbm [shape: bf16[128,128], index: 1, kind: input, shape index: {}]
  %s2 = inlined_call_operand.vmem [shape: f32[1,128], index: 2, kind: input, shape index: {}]
  %s3 = inlined_call_operand.hbm [shape: bf16[128,256], index: 3, kind: input, shape index: {}]
  %s4 = inlined_call_operand.vmem [shape: f32[1,256], index: 4, kind: input, shape index: {}]
  %s5 = inlined_call_operand.hbm [shape: bf16[256,256], index: 5, kind: input, shape index: {}]
  %s6 = inlined_call_operand.vmem [shape: f32[1,256], index: 6, kind: input, shape index: {}]
  %s7 = inlined_call_operand.hbm [shape: bf16[256,128], index: 7, kind: input, shape index: {}]
  %s8 = inlined_call_operand.vmem [shape: f32[1,128], index: 8, kind: input, shape index: {}]
  %s9 = inlined_call_operand.hbm [shape: bf16[128,128], index: 9, kind: input, shape index: {}]
  %s10 = inlined_call_operand.vmem [shape: f32[1,128], index: 10, kind: input, shape index: {}]
  %s11 = inlined_call_operand.hbm [shape: bf16[128,128], index: 11, kind: input, shape index: {}]
  %s12 = inlined_call_operand.vmem [shape: f32[1,128], index: 12, kind: input, shape index: {}]
  %s13 = inlined_call_operand.vmem [shape: f32[16,128], index: 13, kind: output, shape index: {}]
  %s14 = sld [smem:[#allocation0]]
  $region86: #{_forward.1} parent=0
    _
  %s16 = ssub.s32 1, %s14
  %s17 = scalar_select 0, %s16, %s14
  $region1: #{_forward.1} parent=0
    #allocation2 [shape = 'u8[32768]{0}', space=vmem, size = 0x8000, scoped, tag = 'input window, operand 1, single buffered']
    #allocation3 [shape = 's32[1]{0}', space=sflag, size = 0x4, scoped, tag = 'scoped memory for _forward.1']
    #allocation4 [shape = 'u8[65536]{0}', space=vmem, size = 0x10000, scoped, tag = 'input window, operand 3, single buffered']
    #allocation5 [shape = 's32[1]{0}', space=sflag, size = 0x4, scoped, tag = 'scoped memory for _forward.1']
    #allocation6 [shape = 'u8[131072]{0}', space=vmem, size = 0x20000, scoped, tag = 'input window, operand 5, single buffered']
    #allocation7 [shape = 'u8[65536]{0}', space=vmem, size = 0x10000, scoped, tag = 'input window, operand 7, single buffered']
    #allocation8 [shape = 's32[1]{0}', space=sflag, size = 0x4, scoped, tag = 'scoped memory for _forward.1']
    #allocation9 [shape = 'u8[32768]{0}', space=vmem, size = 0x8000, scoped, tag = 'input window, operand 9, single buffered']
    #allocation10 [shape = 'u8[32768]{0}', space=vmem, size = 0x8000, scoped, tag = 'input window, operand 11, single buffered']
    #allocation11 [shape = 's32[1]{0}', space=sflag, size = 0x4, scoped, tag = 'scoped memory for _forward.1']
    %18 = vsyncpa [#allocation3], 0
    %19 = vsyncpa [#allocation5], 0
    %20 = vsyncpa [#allocation8], 0
    %21 = vsyncpa [#allocation11], 0
    // Predicated region
    $region2: #{_forward.1} parent=1 // pred_check
      _
    $region3: #{_forward.1} parent=1 // pred_check_branch
      %23 = sbr.rel (0) target = $region5
    $region4: #{_forward.1} parent=1 // pred_region
      _
    $region5: #{_forward.1} parent=1 // pred_fallthru
      _
    // Predicated region
    $region6: #{_forward.1} parent=1 // pred_check
      _
    $region7: #{_forward.1} parent=1 // pred_check_branch
      %25 = sbr.rel (0) target = $region9
    $region8: #{_forward.1} parent=1 // pred_region
      %s27 = ssub.s32 1024, 1024
      %28 = vsyncadd [#allocation3], %s27
      %s29 = sshll.u32 [#allocation2], 4
      %s30 = int_to_ptr.vmem [resolvable:$true] %s29
      %35 = dma.hbm_to_vmem [thread:$0]  %s1, 1024, %s30, [#allocation3], 64, 64, 4
    $region9: #{_forward.1} parent=1 // pred_fallthru
      _
    // Predicated region
    $region10: #{_forward.1} parent=1 // pred_check
      _
    $region11: #{_forward.1} parent=1 // pred_check_branch
      %37 = sbr.rel (0) target = $region13
    $region12: #{_forward.1} parent=1 // pred_region
      _
    $region13: #{_forward.1} parent=1 // pred_fallthru
      _
    // Predicated region
    $region14: #{_forward.1} parent=1 // pred_check
      _
    $region15: #{_forward.1} parent=1 // pred_check_branch
      %39 = sbr.rel (0) target = $region17
    $region16: #{_forward.1} parent=1 // pred_region
      %s41 = ssub.s32 2048, 2048
      %42 = vsyncadd [#allocation5], %s41
      %s43 = sshll.u32 [#allocation4], 4
      %s44 = int_to_ptr.vmem [resolvable:$true] %s43
      %49 = dma.hbm_to_vmem [thread:$0]  %s3, 2048, %s44, [#allocation5], 128, 128, 8
    $region17: #{_forward.1} parent=1 // pred_fallthru
      _
    // Predicated region
    $region18: #{_forward.1} parent=1 // pred_check
      _
    $region19: #{_forward.1} parent=1 // pred_check_branch
      %51 = sbr.rel (0) target = $region21
    $region20: #{_forward.1} parent=1 // pred_region
      _
    $region21: #{_forward.1} parent=1 // pred_fallthru
      _
    // Predicated region
    $region22: #{_forward.1} parent=1 // pred_check
      _
    $region23: #{_forward.1} parent=1 // pred_check_branch
      %53 = sbr.rel (0) target = $region25
    $region24: #{_forward.1} parent=1 // pred_region
      %s55 = ssub.s32 4096, 4096
      %56 = vsyncadd [#allocation5], %s55
      %s57 = sshll.u32 [#allocation6], 4
      %s58 = int_to_ptr.vmem [resolvable:$true] %s57
      %63 = dma.hbm_to_vmem [thread:$0]  %s5, 4096, %s58, [#allocation5], 128, 128, 8
    $region25: #{_forward.1} parent=1 // pred_fallthru
      _
    // Predicated region
    $region26: #{_forward.1} parent=1 // pred_check
      _
    $region27: #{_forward.1} parent=1 // pred_check_branch
      %65 = sbr.rel (0) target = $region29
    $region28: #{_forward.1} parent=1 // pred_region
      _
    $region29: #{_forward.1} parent=1 // pred_fallthru
      _
    // Predicated region
    $region30: #{_forward.1} parent=1 // pred_check
      _
    $region31: #{_forward.1} parent=1 // pred_check_branch
      %67 = sbr.rel (0) target = $region33
    $region32: #{_forward.1} parent=1 // pred_region
      %s69 = ssub.s32 2048, 2048
      %70 = vsyncadd [#allocation8], %s69
      %s71 = sshll.u32 [#allocation7], 4
      %s72 = int_to_ptr.vmem [resolvable:$true] %s71
      %77 = dma.hbm_to_vmem [thread:$0]  %s7, 2048, %s72, [#allocation8], 64, 64, 4
    $region33: #{_forward.1} parent=1 // pred_fallthru
      _
    // Predicated region
    $region34: #{_forward.1} parent=1 // pred_check
      _
    $region35: #{_forward.1} parent=1 // pred_check_branch
      %79 = sbr.rel (0) target = $region37
    $region36: #{_forward.1} parent=1 // pred_region
      _
    $region37: #{_forward.1} parent=1 // pred_fallthru
      _
    // Predicated region
    $region38: #{_forward.1} parent=1 // pred_check
      _
    $region39: #{_forward.1} parent=1 // pred_check_branch
      %81 = sbr.rel (0) target = $region41
    $region40: #{_forward.1} parent=1 // pred_region
      %s83 = ssub.s32 1024, 1024
      %84 = vsyncadd [#allocation8], %s83
      %s85 = sshll.u32 [#allocation9], 4
      %s86 = int_to_ptr.vmem [resolvable:$true] %s85
      %91 = dma.hbm_to_vmem [thread:$0]  %s9, 1024, %s86, [#allocation8], 64, 64, 4
    $region41: #{_forward.1} parent=1 // pred_fallthru
      _
    // Predicated region
    $region42: #{_forward.1} parent=1 // pred_check
      _
    $region43: #{_forward.1} parent=1 // pred_check_branch
      %93 = sbr.rel (0) target = $region45
    $region44: #{_forward.1} parent=1 // pred_region
      _
    $region45: #{_forward.1} parent=1 // pred_fallthru
      _
    // Predicated region
    $region46: #{_forward.1} parent=1 // pred_check
      _
    $region47: #{_forward.1} parent=1 // pred_check_branch
      %95 = sbr.rel (0) target = $region49
    $region48: #{_forward.1} parent=1 // pred_region
      %s97 = ssub.s32 1024, 1024
      %98 = vsyncadd [#allocation11], %s97
      %s99 = sshll.u32 [#allocation10], 4
      %s100 = int_to_ptr.vmem [resolvable:$true] %s99
      %105 = dma.hbm_to_vmem [thread:$0]  %s11, 1024, %s100, [#allocation11], 64, 64, 4
    $region49: #{_forward.1} parent=1 // pred_fallthru
      _
    // Predicated region
    $region50: #{_forward.1} parent=1 // pred_check
      _
    $region51: #{_forward.1} parent=1 // pred_check_branch
      %107 = sbr.rel (0) target = $region53
    $region52: #{_forward.1} parent=1 // pred_region
      _
    $region53: #{_forward.1} parent=1 // pred_fallthru
      _
    // Predicated region
    $region54: #{_forward.1} parent=1 // pred_check
      _
    $region55: #{_forward.1} parent=1 // pred_check_branch
      %109 = sbr.rel (0) target = $region57
    $region56: #{_forward.1} parent=1 // pred_region
      %110 = dma.done [#allocation3], 1024
    $region57: #{_forward.1} parent=1 // pred_fallthru
      _
    // Predicated region
    $region58: #{_forward.1} parent=1 // pred_check
      _
    $region59: #{_forward.1} parent=1 // pred_check_branch
      %112 = sbr.rel (0) target = $region61
    $region60: #{_forward.1} parent=1 // pred_region
      %113 = dma.done [#allocation5], 2048
    $region61: #{_forward.1} parent=1 // pred_fallthru
      _
    // Predicated region
    $region62: #{_forward.1} parent=1 // pred_check
      _
    $region63: #{_forward.1} parent=1 // pred_check_branch
      %115 = sbr.rel (0) target = $region65
    $region64: #{_forward.1} parent=1 // pred_region
      %116 = dma.done [#allocation5], 4096
    $region65: #{_forward.1} parent=1 // pred_fallthru
      _
    // Predicated region
    $region66: #{_forward.1} parent=1 // pred_check
      _
    $region67: #{_forward.1} parent=1 // pred_check_branch
      %118 = sbr.rel (0) target = $region69
    $region68: #{_forward.1} parent=1 // pred_region
      %119 = dma.done [#allocation8], 2048
    $region69: #{_forward.1} parent=1 // pred_fallthru
      _
    // Predicated region
    $region70: #{_forward.1} parent=1 // pred_check
      _
    $region71: #{_forward.1} parent=1 // pred_check_branch
      %121 = sbr.rel (0) target = $region73
    $region72: #{_forward.1} parent=1 // pred_region
      %122 = dma.done [#allocation8], 1024
    $region73: #{_forward.1} parent=1 // pred_fallthru
      _
    // Predicated region
    $region74: #{_forward.1} parent=1 // pred_check
      _
    $region75: #{_forward.1} parent=1 // pred_check_branch
      %124 = sbr.rel (0) target = $region77
    $region76: #{_forward.1} parent=1 // pred_region
      %125 = dma.done [#allocation11], 1024
    $region77: #{_forward.1} parent=1 // pred_fallthru
      _
    %v127 = vld [vmem:[%s0] sm:$0xf]
    %v128 = vld [vmem:[%s0 + $0x4] sm:$0xf]
    %v129 = vld [vmem:[#allocation2] sm:$0xf]
    %v130 = vld [vmem:[#allocation2 + $0x4] sm:$0xf]
    %v131 = vld [vmem:[#allocation2 + $0x8] sm:$0xf]
    %v132 = vld [vmem:[#allocation2 + $0xc] sm:$0xf]
    %v133 = vld [vmem:[#allocation2 + $0x10] sm:$0xf]
    %v134 = vld [vmem:[#allocation2 + $0x14] sm:$0xf]
    %v135 = vld [vmem:[#allocation2 + $0x18] sm:$0xf]
    %v136 = vld [vmem:[#allocation2 + $0x1c] sm:$0xf]
    %v137 = vld [vmem:[#allocation2 + $0x20] sm:$0xf]
    %v138 = vld [vmem:[#allocation2 + $0x24] sm:$0xf]
    %v139 = vld [vmem:[#allocation2 + $0x28] sm:$0xf]
    %v140 = vld [vmem:[#allocation2 + $0x2c] sm:$0xf]
    %v141 = vld [vmem:[#allocation2 + $0x30] sm:$0xf]
    %v142 = vld [vmem:[#allocation2 + $0x34] sm:$0xf]
    %v143 = vld [vmem:[#allocation2 + $0x38] sm:$0xf]
    %v144 = vld [vmem:[#allocation2 + $0x3c] sm:$0xf]
    %v145 = vld [vmem:[%s2] sm:$0x1]
    %v147 = vlaneseq
    %v148 = vshrl.u32 %v147, 7
    %v149 = vsub.s32 0, %v148
    %v150 = vrot.slane %v145, %v149
    %v154 = vunpack.c.l.b16 %v127
    %v155 = vunpack.c.l.b16 %v128
    %v156 = vpack.c.b16 %v155, %v154
    %v174 = vunpack.c.l.b16 %v129
    %v175 = vunpack.c.l.b16 %v130
    %v176 = vunpack.c.l.b16 %v131
    %v177 = vunpack.c.l.b16 %v132
    %v178 = vunpack.c.l.b16 %v133
    %v179 = vunpack.c.l.b16 %v134
    %v180 = vunpack.c.l.b16 %v135
    %v181 = vunpack.c.l.b16 %v136
    %v182 = vunpack.c.l.b16 %v137
    %v183 = vunpack.c.l.b16 %v138
    %v184 = vunpack.c.l.b16 %v139
    %v185 = vunpack.c.l.b16 %v140
    %v186 = vunpack.c.l.b16 %v141
    %v187 = vunpack.c.l.b16 %v142
    %v188 = vunpack.c.l.b16 %v143
    %v189 = vunpack.c.l.b16 %v144
    %v190 = vpack.c.b16 %v175, %v174
    %v191 = vpack.c.b16 %v177, %v176
    %v192 = vpack.c.b16 %v179, %v178
    %v193 = vpack.c.b16 %v181, %v180
    %v194 = vpack.c.b16 %v183, %v182
    %v195 = vpack.c.b16 %v185, %v184
    %v196 = vpack.c.b16 %v187, %v186
    %v197 = vpack.c.b16 %v189, %v188
    %206 = vmatprep.subr.bf16.mxu0 0
    %207 = vmatpush1.bf16.msra.mxu0 %v190
    %208 = vmatprep.subr.bf16.mxu0 0
    %209 = vmatpush1.bf16.msra.mxu0 %v191
    %210 = vmatprep.subr.bf16.mxu0 0
    %211 = vmatpush1.bf16.msra.mxu0 %v192
    %212 = vmatprep.subr.bf16.mxu0 0
    %213 = vmatpush1.bf16.msra.mxu0 %v193
    %214 = vmatprep.subr.bf16.mxu0 0
    %215 = vmatpush1.bf16.msra.mxu0 %v194
    %216 = vmatprep.subr.bf16.mxu0 0
    %217 = vmatpush1.bf16.msra.mxu0 %v195
    %218 = vmatprep.subr.bf16.mxu0 0
    %219 = vmatpush1.bf16.msra.mxu0 %v196
    %220 = vmatprep.subr.bf16.mxu0 0
    %221 = vmatpush1.bf16.msra.mxu0 %v197
    %222 = vmatprep.subr.bf16.mxu0 0
    %223 = vmatpush1.bf16.msra.mxu0 0
    %224 = vmatprep.subr.bf16.mxu0 0
    %225 = vmatpush1.bf16.msra.mxu0 0
    %226 = vmatprep.subr.bf16.mxu0 0
    %227 = vmatpush1.bf16.msra.mxu0 0
    %228 = vmatprep.subr.bf16.mxu0 0
    %229 = vmatpush1.bf16.msra.mxu0 0
    %230 = vmatprep.subr.bf16.mxu0 0
    %231 = vmatpush1.bf16.msra.mxu0 0
    %232 = vmatprep.subr.bf16.mxu0 0
    %233 = vmatpush1.bf16.msra.mxu0 0
    %234 = vmatprep.subr.bf16.mxu0 0
    %235 = vmatpush1.bf16.msra.mxu0 0
    %236 = vmatprep.subr.bf16.mxu0 0
    %237 = vmatpush1.bf16.msra.mxu0 0
    %238 = vmatprep.mubr.bf16.mxu0 0
    %239 = vmatmul.mubr.bf16.gmra.mrb[0].mxu0 %v156
    %v240 = vpop.f32.mrb[0].mxu0
    %v241 = vadd.f32 %v150, %v240
    %v242 = vpop.f32.mrb[0].mxu0
    %v243 = vpop.f32.mrb[0].mxu0
    %v244 = vadd.f32 %v150, %v243
    %v245 = vpop.f32.mrb[0].mxu0
    %246 = vdwg.mxu0
    %vm247 = vcmp.gt.f32.partialorder %v241, 0.0
    %vm248 = vcmp.gt.f32.partialorder %v244, 0.0
    %v249 = vmul.f32 %v241, 0.01
    %v250 = vmul.f32 %v244, 0.01
    %v251 = vsel %vm247, %v241, %v249
    %v252 = vsel %vm248, %v244, %v250
    %v253 = vpack.c.bf16 %v252, %v251
    %v254 = vld [vmem:[#allocation4] sm:$0xff]
    %v255 = vld [vmem:[#allocation4 + $0x8] sm:$0xff]
    %v256 = vld [vmem:[#allocation4 + $0x10] sm:$0xff]
    %v257 = vld [vmem:[#allocation4 + $0x18] sm:$0xff]
    %v258 = vld [vmem:[#allocation4 + $0x20] sm:$0xff]
    %v259 = vld [vmem:[#allocation4 + $0x28] sm:$0xff]
    %v260 = vld [vmem:[#allocation4 + $0x30] sm:$0xff]
    %v261 = vld [vmem:[#allocation4 + $0x38] sm:$0xff]
    %v262 = vld [vmem:[#allocation4 + $0x40] sm:$0xff]
    %v263 = vld [vmem:[#allocation4 + $0x48] sm:$0xff]
    %v264 = vld [vmem:[#allocation4 + $0x50] sm:$0xff]
    %v265 = vld [vmem:[#allocation4 + $0x58] sm:$0xff]
    %v266 = vld [vmem:[#allocation4 + $0x60] sm:$0xff]
    %v267 = vld [vmem:[#allocation4 + $0x68] sm:$0xff]
    %v268 = vld [vmem:[#allocation4 + $0x70] sm:$0xff]
    %v269 = vld [vmem:[#allocation4 + $0x78] sm:$0xff]
    %v270 = vld [vmem:[%s4] sm:$0x3]
    %v272 = vlaneseq
    %v273 = vshrl.u32 %v272, 7
    %v274 = vsub.s32 0, %v273
    %v275 = vrot.slane %v270, %v274
    %v276 = vlaneseq
    %v277 = vshrl.u32 %v276, 7
    %v278 = vsub.s32 1, %v277
    %v279 = vrot.slane %v270, %v278
    %v298 = vunpack.c.l.b16 %v254
    %v299 = vunpack.c.h.b16 %v254
    %v300 = vunpack.c.l.b16 %v255
    %v301 = vunpack.c.h.b16 %v255
    %v302 = vunpack.c.l.b16 %v256
    %v303 = vunpack.c.h.b16 %v256
    %v304 = vunpack.c.l.b16 %v257
    %v305 = vunpack.c.h.b16 %v257
    %v306 = vunpack.c.l.b16 %v258
    %v307 = vunpack.c.h.b16 %v258
    %v308 = vunpack.c.l.b16 %v259
    %v309 = vunpack.c.h.b16 %v259
    %v310 = vunpack.c.l.b16 %v260
    %v311 = vunpack.c.h.b16 %v260
    %v312 = vunpack.c.l.b16 %v261
    %v313 = vunpack.c.h.b16 %v261
    %v314 = vunpack.c.l.b16 %v262
    %v315 = vunpack.c.h.b16 %v262
    %v316 = vunpack.c.l.b16 %v263
    %v317 = vunpack.c.h.b16 %v263
    %v318 = vunpack.c.l.b16 %v264
    %v319 = vunpack.c.h.b16 %v264
    %v320 = vunpack.c.l.b16 %v265
    %v321 = vunpack.c.h.b16 %v265
    %v322 = vunpack.c.l.b16 %v266
    %v323 = vunpack.c.h.b16 %v266
    %v324 = vunpack.c.l.b16 %v267
    %v325 = vunpack.c.h.b16 %v267
    %v326 = vunpack.c.l.b16 %v268
    %v327 = vunpack.c.h.b16 %v268
    %v328 = vunpack.c.l.b16 %v269
    %v329 = vunpack.c.h.b16 %v269
    %v330 = vpack.c.b16 %v300, %v298
    %v331 = vpack.c.b16 %v301, %v299
    %v332 = vpack.c.b16 %v304, %v302
    %v333 = vpack.c.b16 %v305, %v303
    %v334 = vpack.c.b16 %v308, %v306
    %v335 = vpack.c.b16 %v309, %v307
    %v336 = vpack.c.b16 %v312, %v310
    %v337 = vpack.c.b16 %v313, %v311
    %v338 = vpack.c.b16 %v316, %v314
    %v339 = vpack.c.b16 %v317, %v315
    %v340 = vpack.c.b16 %v320, %v318
    %v341 = vpack.c.b16 %v321, %v319
    %v342 = vpack.c.b16 %v324, %v322
    %v343 = vpack.c.b16 %v325, %v323
    %v344 = vpack.c.b16 %v328, %v326
    %v345 = vpack.c.b16 %v329, %v327
    %362 = vmatprep.subr.bf16.mxu0 %v331
    %363 = vmatpush1.bf16.msra.mxu0 %v330
    %364 = vmatprep.subr.bf16.mxu0 %v333
    %365 = vmatpush1.bf16.msra.mxu0 %v332
    %366 = vmatprep.subr.bf16.mxu0 %v335
    %367 = vmatpush1.bf16.msra.mxu0 %v334
    %368 = vmatprep.subr.bf16.mxu0 %v337
    %369 = vmatpush1.bf16.msra.mxu0 %v336
    %370 = vmatprep.subr.bf16.mxu0 %v339
    %371 = vmatpush1.bf16.msra.mxu0 %v338
    %372 = vmatprep.subr.bf16.mxu0 %v341
    %373 = vmatpush1.bf16.msra.mxu0 %v340
    %374 = vmatprep.subr.bf16.mxu0 %v343
    %375 = vmatpush1.bf16.msra.mxu0 %v342
    %376 = vmatprep.subr.bf16.mxu0 %v345
    %377 = vmatpush1.bf16.msra.mxu0 %v344
    %378 = vmatprep.subr.bf16.mxu0 0
    %379 = vmatpush1.bf16.msra.mxu0 0
    %380 = vmatprep.subr.bf16.mxu0 0
    %381 = vmatpush1.bf16.msra.mxu0 0
    %382 = vmatprep.subr.bf16.mxu0 0
    %383 = vmatpush1.bf16.msra.mxu0 0
    %384 = vmatprep.subr.bf16.mxu0 0
    %385 = vmatpush1.bf16.msra.mxu0 0
    %386 = vmatprep.subr.bf16.mxu0 0
    %387 = vmatpush1.bf16.msra.mxu0 0
    %388 = vmatprep.subr.bf16.mxu0 0
    %389 = vmatpush1.bf16.msra.mxu0 0
    %390 = vmatprep.subr.bf16.mxu0 0
    %391 = vmatpush1.bf16.msra.mxu0 0
    %392 = vmatprep.subr.bf16.mxu0 0
    %393 = vmatpush1.bf16.msra.mxu0 0
    %394 = vmatprep.mubr.bf16.mxu0 0
    %395 = vmatmul.mubr.bf16.gmra.mrb[0].mxu0 %v253
    %v396 = vpop.f32.mrb[0].mxu0
    %v397 = vadd.f32 %v275, %v396
    %v398 = vpop.f32.mrb[0].mxu0
    %v399 = vadd.f32 %v279, %v398
    %v400 = vpop.f32.mrb[0].mxu0
    %v401 = vadd.f32 %v275, %v400
    %v402 = vpop.f32.mrb[0].mxu0
    %v403 = vadd.f32 %v279, %v402
    %404 = vdwg.mxu0
    %vm405 = vcmp.gt.f32.partialorder %v397, 0.0
    %vm406 = vcmp.gt.f32.partialorder %v399, 0.0
    %vm407 = vcmp.gt.f32.partialorder %v401, 0.0
    %vm408 = vcmp.gt.f32.partialorder %v403, 0.0
    %v409 = vmul.f32 %v397, 0.01
    %v410 = vmul.f32 %v399, 0.01
    %v411 = vmul.f32 %v401, 0.01
    %v412 = vmul.f32 %v403, 0.01
    %v413 = vsel %vm405, %v397, %v409
    %v414 = vsel %vm406, %v399, %v410
    %v415 = vsel %vm407, %v401, %v411
    %v416 = vsel %vm408, %v403, %v412
    %v417 = vpack.c.bf16 %v415, %v413
    %v418 = vpack.c.bf16 %v416, %v414
    %v419 = vld [vmem:[#allocation6] sm:$0xff]
    %v420 = vld [vmem:[#allocation6 + $0x8] sm:$0xff]
    %v421 = vld [vmem:[#allocation6 + $0x10] sm:$0xff]
    %v422 = vld [vmem:[#allocation6 + $0x18] sm:$0xff]
    %v423 = vld [vmem:[#allocation6 + $0x20] sm:$0xff]
    %v424 = vld [vmem:[#allocation6 + $0x28] sm:$0xff]
    %v425 = vld [vmem:[#allocation6 + $0x30] sm:$0xff]
    %v426 = vld [vmem:[#allocation6 + $0x38] sm:$0xff]
    %v427 = vld [vmem:[#allocation6 + $0x40] sm:$0xff]
    %v428 = vld [vmem:[#allocation6 + $0x48] sm:$0xff]
    %v429 = vld [vmem:[#allocation6 + $0x50] sm:$0xff]
    %v430 = vld [vmem:[#allocation6 + $0x58] sm:$0xff]
    %v431 = vld [vmem:[#allocation6 + $0x60] sm:$0xff]
    %v432 = vld [vmem:[#allocation6 + $0x68] sm:$0xff]
    %v433 = vld [vmem:[#allocation6 + $0x70] sm:$0xff]
    %v434 = vld [vmem:[#allocation6 + $0x78] sm:$0xff]
    %v435 = vld [vmem:[#allocation6 + $0x80] sm:$0xff]
    %v436 = vld [vmem:[#allocation6 + $0x88] sm:$0xff]
    %v437 = vld [vmem:[#allocation6 + $0x90] sm:$0xff]
    %v438 = vld [vmem:[#allocation6 + $0x98] sm:$0xff]
    %v439 = vld [vmem:[#allocation6 + $0xa0] sm:$0xff]
    %v440 = vld [vmem:[#allocation6 + $0xa8] sm:$0xff]
    %v441 = vld [vmem:[#allocation6 + $0xb0] sm:$0xff]
    %v442 = vld [vmem:[#allocation6 + $0xb8] sm:$0xff]
    %v443 = vld [vmem:[#allocation6 + $0xc0] sm:$0xff]
    %v444 = vld [vmem:[#allocation6 + $0xc8] sm:$0xff]
    %v445 = vld [vmem:[#allocation6 + $0xd0] sm:$0xff]
    %v446 = vld [vmem:[#allocation6 + $0xd8] sm:$0xff]
    %v447 = vld [vmem:[#allocation6 + $0xe0] sm:$0xff]
    %v448 = vld [vmem:[#allocation6 + $0xe8] sm:$0xff]
    %v449 = vld [vmem:[#allocation6 + $0xf0] sm:$0xff]
    %v450 = vld [vmem:[#allocation6 + $0xf8] sm:$0xff]
    %v451 = vld [vmem:[%s6] sm:$0x3]
    %v453 = vlaneseq
    %v454 = vshrl.u32 %v453, 7
    %v455 = vsub.s32 0, %v454
    %v456 = vrot.slane %v451, %v455
    %v457 = vlaneseq
    %v458 = vshrl.u32 %v457, 7
    %v459 = vsub.s32 1, %v458
    %v460 = vrot.slane %v451, %v459
    %v495 = vunpack.c.l.b16 %v419
    %v496 = vunpack.c.h.b16 %v419
    %v497 = vunpack.c.l.b16 %v420
    %v498 = vunpack.c.h.b16 %v420
    %v499 = vunpack.c.l.b16 %v421
    %v500 = vunpack.c.h.b16 %v421
    %v501 = vunpack.c.l.b16 %v422
    %v502 = vunpack.c.h.b16 %v422
    %v503 = vunpack.c.l.b16 %v423
    %v504 = vunpack.c.h.b16 %v423
    %v505 = vunpack.c.l.b16 %v424
    %v506 = vunpack.c.h.b16 %v424
    %v507 = vunpack.c.l.b16 %v425
    %v508 = vunpack.c.h.b16 %v425
    %v509 = vunpack.c.l.b16 %v426
    %v510 = vunpack.c.h.b16 %v426
    %v511 = vunpack.c.l.b16 %v427
    %v512 = vunpack.c.h.b16 %v427
    %v513 = vunpack.c.l.b16 %v428
    %v514 = vunpack.c.h.b16 %v428
    %v515 = vunpack.c.l.b16 %v429
    %v516 = vunpack.c.h.b16 %v429
    %v517 = vunpack.c.l.b16 %v430
    %v518 = vunpack.c.h.b16 %v430
    %v519 = vunpack.c.l.b16 %v431
    %v520 = vunpack.c.h.b16 %v431
    %v521 = vunpack.c.l.b16 %v432
    %v522 = vunpack.c.h.b16 %v432
    %v523 = vunpack.c.l.b16 %v433
    %v524 = vunpack.c.h.b16 %v433
    %v525 = vunpack.c.l.b16 %v434
    %v526 = vunpack.c.h.b16 %v434
    %v527 = vunpack.c.l.b16 %v435
    %v528 = vunpack.c.h.b16 %v435
    %v529 = vunpack.c.l.b16 %v436
    %v530 = vunpack.c.h.b16 %v436
    %v531 = vunpack.c.l.b16 %v437
    %v532 = vunpack.c.h.b16 %v437
    %v533 = vunpack.c.l.b16 %v438
    %v534 = vunpack.c.h.b16 %v438
    %v535 = vunpack.c.l.b16 %v439
    %v536 = vunpack.c.h.b16 %v439
    %v537 = vunpack.c.l.b16 %v440
    %v538 = vunpack.c.h.b16 %v440
    %v539 = vunpack.c.l.b16 %v441
    %v540 = vunpack.c.h.b16 %v441
    %v541 = vunpack.c.l.b16 %v442
    %v542 = vunpack.c.h.b16 %v442
    %v543 = vunpack.c.l.b16 %v443
    %v544 = vunpack.c.h.b16 %v443
    %v545 = vunpack.c.l.b16 %v444
    %v546 = vunpack.c.h.b16 %v444
    %v547 = vunpack.c.l.b16 %v445
    %v548 = vunpack.c.h.b16 %v445
    %v549 = vunpack.c.l.b16 %v446
    %v550 = vunpack.c.h.b16 %v446
    %v551 = vunpack.c.l.b16 %v447
    %v552 = vunpack.c.h.b16 %v447
    %v553 = vunpack.c.l.b16 %v448
    %v554 = vunpack.c.h.b16 %v448
    %v555 = vunpack.c.l.b16 %v449
    %v556 = vunpack.c.h.b16 %v449
    %v557 = vunpack.c.l.b16 %v450
    %v558 = vunpack.c.h.b16 %v450
    %v559 = vpack.c.b16 %v497, %v495
    %v560 = vpack.c.b16 %v498, %v496
    %v561 = vpack.c.b16 %v501, %v499
    %v562 = vpack.c.b16 %v502, %v500
    %v563 = vpack.c.b16 %v505, %v503
    %v564 = vpack.c.b16 %v506, %v504
    %v565 = vpack.c.b16 %v509, %v507
    %v566 = vpack.c.b16 %v510, %v508
    %v567 = vpack.c.b16 %v513, %v511
    %v568 = vpack.c.b16 %v514, %v512
    %v569 = vpack.c.b16 %v517, %v515
    %v570 = vpack.c.b16 %v518, %v516
    %v571 = vpack.c.b16 %v521, %v519
    %v572 = vpack.c.b16 %v522, %v520
    %v573 = vpack.c.b16 %v525, %v523
    %v574 = vpack.c.b16 %v526, %v524
    %v575 = vpack.c.b16 %v529, %v527
    %v576 = vpack.c.b16 %v530, %v528
    %v577 = vpack.c.b16 %v533, %v531
    %v578 = vpack.c.b16 %v534, %v532
    %v579 = vpack.c.b16 %v537, %v535
    %v580 = vpack.c.b16 %v538, %v536
    %v581 = vpack.c.b16 %v541, %v539
    %v582 = vpack.c.b16 %v542, %v540
    %v583 = vpack.c.b16 %v545, %v543
    %v584 = vpack.c.b16 %v546, %v544
    %v585 = vpack.c.b16 %v549, %v547
    %v586 = vpack.c.b16 %v550, %v548
    %v587 = vpack.c.b16 %v553, %v551
    %v588 = vpack.c.b16 %v554, %v552
    %v589 = vpack.c.b16 %v557, %v555
    %v590 = vpack.c.b16 %v558, %v556
    %623 = vmatprep.subr.bf16.mxu0 %v560
    %624 = vmatpush1.bf16.msra.mxu0 %v559
    %625 = vmatprep.subr.bf16.mxu0 %v562
    %626 = vmatpush1.bf16.msra.mxu0 %v561
    %627 = vmatprep.subr.bf16.mxu0 %v564
    %628 = vmatpush1.bf16.msra.mxu0 %v563
    %629 = vmatprep.subr.bf16.mxu0 %v566
    %630 = vmatpush1.bf16.msra.mxu0 %v565
    %631 = vmatprep.subr.bf16.mxu0 %v568
    %632 = vmatpush1.bf16.msra.mxu0 %v567
    %633 = vmatprep.subr.bf16.mxu0 %v570
    %634 = vmatpush1.bf16.msra.mxu0 %v569
    %635 = vmatprep.subr.bf16.mxu0 %v572
    %636 = vmatpush1.bf16.msra.mxu0 %v571
    %637 = vmatprep.subr.bf16.mxu0 %v574
    %638 = vmatpush1.bf16.msra.mxu0 %v573
    %639 = vmatprep.subr.bf16.mxu0 %v576
    %640 = vmatpush1.bf16.msra.mxu0 %v575
    %641 = vmatprep.subr.bf16.mxu0 %v578
    %642 = vmatpush1.bf16.msra.mxu0 %v577
    %643 = vmatprep.subr.bf16.mxu0 %v580
    %644 = vmatpush1.bf16.msra.mxu0 %v579
    %645 = vmatprep.subr.bf16.mxu0 %v582
    %646 = vmatpush1.bf16.msra.mxu0 %v581
    %647 = vmatprep.subr.bf16.mxu0 %v584
    %648 = vmatpush1.bf16.msra.mxu0 %v583
    %649 = vmatprep.subr.bf16.mxu0 %v586
    %650 = vmatpush1.bf16.msra.mxu0 %v585
    %651 = vmatprep.subr.bf16.mxu0 %v588
    %652 = vmatpush1.bf16.msra.mxu0 %v587
    %653 = vmatprep.subr.bf16.mxu0 %v590
    %654 = vmatpush1.bf16.msra.mxu0 %v589
    %655 = vmatprep.mubr.bf16.mxu0 %v418
    %656 = vmatmul.mubr.bf16.gmra.mrb[0].mxu0 %v417
    %v657 = vpop.f32.mrb[0].mxu0
    %v658 = vadd.f32 %v456, %v657
    %v659 = vpop.f32.mrb[0].mxu0
    %v660 = vadd.f32 %v460, %v659
    %v661 = vpop.f32.mrb[0].mxu0
    %v662 = vadd.f32 %v456, %v661
    %v663 = vpop.f32.mrb[0].mxu0
    %v664 = vadd.f32 %v460, %v663
    %665 = vdwg.mxu0
    %vm666 = vcmp.gt.f32.partialorder %v658, 0.0
    %vm667 = vcmp.gt.f32.partialorder %v660, 0.0
    %vm668 = vcmp.gt.f32.partialorder %v662, 0.0
    %vm669 = vcmp.gt.f32.partialorder %v664, 0.0
    %v670 = vmul.f32 %v658, 0.01
    %v671 = vmul.f32 %v660, 0.01
    %v672 = vmul.f32 %v662, 0.01
    %v673 = vmul.f32 %v664, 0.01
    %v674 = vsel %vm666, %v658, %v670
    %v675 = vsel %vm667, %v660, %v671
    %v676 = vsel %vm668, %v662, %v672
    %v677 = vsel %vm669, %v664, %v673
    %v678 = vpack.c.bf16 %v676, %v674
    %v679 = vpack.c.bf16 %v677, %v675
    %v680 = vld [vmem:[#allocation7] sm:$0xf]
    %v681 = vld [vmem:[#allocation7 + $0x4] sm:$0xf]
    %v682 = vld [vmem:[#allocation7 + $0x8] sm:$0xf]
    %v683 = vld [vmem:[#allocation7 + $0xc] sm:$0xf]
    %v684 = vld [vmem:[#allocation7 + $0x10] sm:$0xf]
    %v685 = vld [vmem:[#allocation7 + $0x14] sm:$0xf]
    %v686 = vld [vmem:[#allocation7 + $0x18] sm:$0xf]
    %v687 = vld [vmem:[#allocation7 + $0x1c] sm:$0xf]
    %v688 = vld [vmem:[#allocation7 + $0x20] sm:$0xf]
    %v689 = vld [vmem:[#allocation7 + $0x24] sm:$0xf]
    %v690 = vld [vmem:[#allocation7 + $0x28] sm:$0xf]
    %v691 = vld [vmem:[#allocation7 + $0x2c] sm:$0xf]
    %v692 = vld [vmem:[#allocation7 + $0x30] sm:$0xf]
    %v693 = vld [vmem:[#allocation7 + $0x34] sm:$0xf]
    %v694 = vld [vmem:[#allocation7 + $0x38] sm:$0xf]
    %v695 = vld [vmem:[#allocation7 + $0x3c] sm:$0xf]
    %v696 = vld [vmem:[#allocation7 + $0x40] sm:$0xf]
    %v697 = vld [vmem:[#allocation7 + $0x44] sm:$0xf]
    %v698 = vld [vmem:[#allocation7 + $0x48] sm:$0xf]
    %v699 = vld [vmem:[#allocation7 + $0x4c] sm:$0xf]
    %v700 = vld [vmem:[#allocation7 + $0x50] sm:$0xf]
    %v701 = vld [vmem:[#allocation7 + $0x54] sm:$0xf]
    %v702 = vld [vmem:[#allocation7 + $0x58] sm:$0xf]
    %v703 = vld [vmem:[#allocation7 + $0x5c] sm:$0xf]
    %v704 = vld [vmem:[#allocation7 + $0x60] sm:$0xf]
    %v705 = vld [vmem:[#allocation7 + $0x64] sm:$0xf]
    %v706 = vld [vmem:[#allocation7 + $0x68] sm:$0xf]
    %v707 = vld [vmem:[#allocation7 + $0x6c] sm:$0xf]
    %v708 = vld [vmem:[#allocation7 + $0x70] sm:$0xf]
    %v709 = vld [vmem:[#allocation7 + $0x74] sm:$0xf]
    %v710 = vld [vmem:[#allocation7 + $0x78] sm:$0xf]
    %v711 = vld [vmem:[#allocation7 + $0x7c] sm:$0xf]
    %v712 = vld [vmem:[%s8] sm:$0x1]
    %v714 = vlaneseq
    %v715 = vshrl.u32 %v714, 7
    %v716 = vsub.s32 0, %v715
    %v717 = vrot.slane %v712, %v716
    %v751 = vunpack.c.l.b16 %v680
    %v752 = vunpack.c.l.b16 %v681
    %v753 = vunpack.c.l.b16 %v682
    %v754 = vunpack.c.l.b16 %v683
    %v755 = vunpack.c.l.b16 %v684
    %v756 = vunpack.c.l.b16 %v685
    %v757 = vunpack.c.l.b16 %v686
    %v758 = vunpack.c.l.b16 %v687
    %v759 = vunpack.c.l.b16 %v688
    %v760 = vunpack.c.l.b16 %v689
    %v761 = vunpack.c.l.b16 %v690
    %v762 = vunpack.c.l.b16 %v691
    %v763 = vunpack.c.l.b16 %v692
    %v764 = vunpack.c.l.b16 %v693
    %v765 = vunpack.c.l.b16 %v694
    %v766 = vunpack.c.l.b16 %v695
    %v767 = vunpack.c.l.b16 %v696
    %v768 = vunpack.c.l.b16 %v697
    %v769 = vunpack.c.l.b16 %v698
    %v770 = vunpack.c.l.b16 %v699
    %v771 = vunpack.c.l.b16 %v700
    %v772 = vunpack.c.l.b16 %v701
    %v773 = vunpack.c.l.b16 %v702
    %v774 = vunpack.c.l.b16 %v703
    %v775 = vunpack.c.l.b16 %v704
    %v776 = vunpack.c.l.b16 %v705
    %v777 = vunpack.c.l.b16 %v706
    %v778 = vunpack.c.l.b16 %v707
    %v779 = vunpack.c.l.b16 %v708
    %v780 = vunpack.c.l.b16 %v709
    %v781 = vunpack.c.l.b16 %v710
    %v782 = vunpack.c.l.b16 %v711
    %v783 = vpack.c.b16 %v752, %v751
    %v784 = vpack.c.b16 %v754, %v753
    %v785 = vpack.c.b16 %v756, %v755
    %v786 = vpack.c.b16 %v758, %v757
    %v787 = vpack.c.b16 %v760, %v759
    %v788 = vpack.c.b16 %v762, %v761
    %v789 = vpack.c.b16 %v764, %v763
    %v790 = vpack.c.b16 %v766, %v765
    %v791 = vpack.c.b16 %v768, %v767
    %v792 = vpack.c.b16 %v770, %v769
    %v793 = vpack.c.b16 %v772, %v771
    %v794 = vpack.c.b16 %v774, %v773
    %v795 = vpack.c.b16 %v776, %v775
    %v796 = vpack.c.b16 %v778, %v777
    %v797 = vpack.c.b16 %v780, %v779
    %v798 = vpack.c.b16 %v782, %v781
    %815 = vmatprep.subr.bf16.mxu0 0
    %816 = vmatpush1.bf16.msra.mxu0 %v783
    %817 = vmatprep.subr.bf16.mxu0 0
    %818 = vmatpush1.bf16.msra.mxu0 %v784
    %819 = vmatprep.subr.bf16.mxu0 0
    %820 = vmatpush1.bf16.msra.mxu0 %v785
    %821 = vmatprep.subr.bf16.mxu0 0
    %822 = vmatpush1.bf16.msra.mxu0 %v786
    %823 = vmatprep.subr.bf16.mxu0 0
    %824 = vmatpush1.bf16.msra.mxu0 %v787
    %825 = vmatprep.subr.bf16.mxu0 0
    %826 = vmatpush1.bf16.msra.mxu0 %v788
    %827 = vmatprep.subr.bf16.mxu0 0
    %828 = vmatpush1.bf16.msra.mxu0 %v789
    %829 = vmatprep.subr.bf16.mxu0 0
    %830 = vmatpush1.bf16.msra.mxu0 %v790
    %831 = vmatprep.subr.bf16.mxu0 0
    %832 = vmatpush1.bf16.msra.mxu0 %v791
    %833 = vmatprep.subr.bf16.mxu0 0
    %834 = vmatpush1.bf16.msra.mxu0 %v792
    %835 = vmatprep.subr.bf16.mxu0 0
    %836 = vmatpush1.bf16.msra.mxu0 %v793
    %837 = vmatprep.subr.bf16.mxu0 0
    %838 = vmatpush1.bf16.msra.mxu0 %v794
    %839 = vmatprep.subr.bf16.mxu0 0
    %840 = vmatpush1.bf16.msra.mxu0 %v795
    %841 = vmatprep.subr.bf16.mxu0 0
    %842 = vmatpush1.bf16.msra.mxu0 %v796
    %843 = vmatprep.subr.bf16.mxu0 0
    %844 = vmatpush1.bf16.msra.mxu0 %v797
    %845 = vmatprep.subr.bf16.mxu0 0
    %846 = vmatpush1.bf16.msra.mxu0 %v798
    %847 = vmatprep.mubr.bf16.mxu0 %v679
    %848 = vmatmul.mubr.bf16.gmra.mrb[0].mxu0 %v678
    %v849 = vpop.f32.mrb[0].mxu0
    %v850 = vadd.f32 %v717, %v849
    %v851 = vpop.f32.mrb[0].mxu0
    %v852 = vpop.f32.mrb[0].mxu0
    %v853 = vadd.f32 %v717, %v852
    %v854 = vpop.f32.mrb[0].mxu0
    %855 = vdwg.mxu0
    %vm856 = vcmp.gt.f32.partialorder %v850, 0.0
    %vm857 = vcmp.gt.f32.partialorder %v853, 0.0
    %v858 = vmul.f32 %v850, 0.01
    %v859 = vmul.f32 %v853, 0.01
    %v860 = vsel %vm856, %v850, %v858
    %v861 = vsel %vm857, %v853, %v859
    %v862 = vpack.c.bf16 %v861, %v860
    %v863 = vld [vmem:[#allocation9] sm:$0xf]
    %v864 = vld [vmem:[#allocation9 + $0x4] sm:$0xf]
    %v865 = vld [vmem:[#allocation9 + $0x8] sm:$0xf]
    %v866 = vld [vmem:[#allocation9 + $0xc] sm:$0xf]
    %v867 = vld [vmem:[#allocation9 + $0x10] sm:$0xf]
    %v868 = vld [vmem:[#allocation9 + $0x14] sm:$0xf]
    %v869 = vld [vmem:[#allocation9 + $0x18] sm:$0xf]
    %v870 = vld [vmem:[#allocation9 + $0x1c] sm:$0xf]
    %v871 = vld [vmem:[#allocation9 + $0x20] sm:$0xf]
    %v872 = vld [vmem:[#allocation9 + $0x24] sm:$0xf]
    %v873 = vld [vmem:[#allocation9 + $0x28] sm:$0xf]
    %v874 = vld [vmem:[#allocation9 + $0x2c] sm:$0xf]
    %v875 = vld [vmem:[#allocation9 + $0x30] sm:$0xf]
    %v876 = vld [vmem:[#allocation9 + $0x34] sm:$0xf]
    %v877 = vld [vmem:[#allocation9 + $0x38] sm:$0xf]
    %v878 = vld [vmem:[#allocation9 + $0x3c] sm:$0xf]
    %v879 = vld [vmem:[%s10] sm:$0x1]
    %v881 = vlaneseq
    %v882 = vshrl.u32 %v881, 7
    %v883 = vsub.s32 0, %v882
    %v884 = vrot.slane %v879, %v883
    %v902 = vunpack.c.l.b16 %v863
    %v903 = vunpack.c.l.b16 %v864
    %v904 = vunpack.c.l.b16 %v865
    %v905 = vunpack.c.l.b16 %v866
    %v906 = vunpack.c.l.b16 %v867
    %v907 = vunpack.c.l.b16 %v868
    %v908 = vunpack.c.l.b16 %v869
    %v909 = vunpack.c.l.b16 %v870
    %v910 = vunpack.c.l.b16 %v871
    %v911 = vunpack.c.l.b16 %v872
    %v912 = vunpack.c.l.b16 %v873
    %v913 = vunpack.c.l.b16 %v874
    %v914 = vunpack.c.l.b16 %v875
    %v915 = vunpack.c.l.b16 %v876
    %v916 = vunpack.c.l.b16 %v877
    %v917 = vunpack.c.l.b16 %v878
    %v918 = vpack.c.b16 %v903, %v902
    %v919 = vpack.c.b16 %v905, %v904
    %v920 = vpack.c.b16 %v907, %v906
    %v921 = vpack.c.b16 %v909, %v908
    %v922 = vpack.c.b16 %v911, %v910
    %v923 = vpack.c.b16 %v913, %v912
    %v924 = vpack.c.b16 %v915, %v914
    %v925 = vpack.c.b16 %v917, %v916
    %934 = vmatprep.subr.bf16.mxu0 0
    %935 = vmatpush1.bf16.msra.mxu0 %v918
    %936 = vmatprep.subr.bf16.mxu0 0
    %937 = vmatpush1.bf16.msra.mxu0 %v919
    %938 = vmatprep.subr.bf16.mxu0 0
    %939 = vmatpush1.bf16.msra.mxu0 %v920
    %940 = vmatprep.subr.bf16.mxu0 0
    %941 = vmatpush1.bf16.msra.mxu0 %v921
    %942 = vmatprep.subr.bf16.mxu0 0
    %943 = vmatpush1.bf16.msra.mxu0 %v922
    %944 = vmatprep.subr.bf16.mxu0 0
    %945 = vmatpush1.bf16.msra.mxu0 %v923
    %946 = vmatprep.subr.bf16.mxu0 0
    %947 = vmatpush1.bf16.msra.mxu0 %v924
    %948 = vmatprep.subr.bf16.mxu0 0
    %949 = vmatpush1.bf16.msra.mxu0 %v925
    %950 = vmatprep.subr.bf16.mxu0 0
    %951 = vmatpush1.bf16.msra.mxu0 0
    %952 = vmatprep.subr.bf16.mxu0 0
    %953 = vmatpush1.bf16.msra.mxu0 0
    %954 = vmatprep.subr.bf16.mxu0 0
    %955 = vmatpush1.bf16.msra.mxu0 0
    %956 = vmatprep.subr.bf16.mxu0 0
    %957 = vmatpush1.bf16.msra.mxu0 0
    %958 = vmatprep.subr.bf16.mxu0 0
    %959 = vmatpush1.bf16.msra.mxu0 0
    %960 = vmatprep.subr.bf16.mxu0 0
    %961 = vmatpush1.bf16.msra.mxu0 0
    %962 = vmatprep.subr.bf16.mxu0 0
    %963 = vmatpush1.bf16.msra.mxu0 0
    %964 = vmatprep.subr.bf16.mxu0 0
    %965 = vmatpush1.bf16.msra.mxu0 0
    %966 = vmatprep.mubr.bf16.mxu0 0
    %967 = vmatmul.mubr.bf16.gmra.mrb[0].mxu0 %v862
    %v968 = vpop.f32.mrb[0].mxu0
    %v969 = vadd.f32 %v884, %v968
    %v970 = vpop.f32.mrb[0].mxu0
    %v971 = vpop.f32.mrb[0].mxu0
    %v972 = vadd.f32 %v884, %v971
    %v973 = vpop.f32.mrb[0].mxu0
    %974 = vdwg.mxu0
    %vm975 = vcmp.gt.f32.partialorder %v969, 0.0
    %vm976 = vcmp.gt.f32.partialorder %v972, 0.0
    %v977 = vmul.f32 %v969, 0.01
    %v978 = vmul.f32 %v972, 0.01
    %v979 = vsel %vm975, %v969, %v977
    %v980 = vsel %vm976, %v972, %v978
    %v981 = vpack.c.bf16 %v980, %v979
    %v982 = vld [vmem:[#allocation10] sm:$0xf]
    %v983 = vld [vmem:[#allocation10 + $0x4] sm:$0xf]
    %v984 = vld [vmem:[#allocation10 + $0x8] sm:$0xf]
    %v985 = vld [vmem:[#allocation10 + $0xc] sm:$0xf]
    %v986 = vld [vmem:[#allocation10 + $0x10] sm:$0xf]
    %v987 = vld [vmem:[#allocation10 + $0x14] sm:$0xf]
    %v988 = vld [vmem:[#allocation10 + $0x18] sm:$0xf]
    %v989 = vld [vmem:[#allocation10 + $0x1c] sm:$0xf]
    %v990 = vld [vmem:[#allocation10 + $0x20] sm:$0xf]
    %v991 = vld [vmem:[#allocation10 + $0x24] sm:$0xf]
    %v992 = vld [vmem:[#allocation10 + $0x28] sm:$0xf]
    %v993 = vld [vmem:[#allocation10 + $0x2c] sm:$0xf]
    %v994 = vld [vmem:[#allocation10 + $0x30] sm:$0xf]
    %v995 = vld [vmem:[#allocation10 + $0x34] sm:$0xf]
    %v996 = vld [vmem:[#allocation10 + $0x38] sm:$0xf]
    %v997 = vld [vmem:[#allocation10 + $0x3c] sm:$0xf]
    %v998 = vld [vmem:[%s12] sm:$0x1]
    %v1000 = vlaneseq
    %v1001 = vshrl.u32 %v1000, 7
    %v1002 = vsub.s32 0, %v1001
    %v1003 = vrot.slane %v998, %v1002
    %v1021 = vunpack.c.l.b16 %v982
    %v1022 = vunpack.c.l.b16 %v983
    %v1023 = vunpack.c.l.b16 %v984
    %v1024 = vunpack.c.l.b16 %v985
    %v1025 = vunpack.c.l.b16 %v986
    %v1026 = vunpack.c.l.b16 %v987
    %v1027 = vunpack.c.l.b16 %v988
    %v1028 = vunpack.c.l.b16 %v989
    %v1029 = vunpack.c.l.b16 %v990
    %v1030 = vunpack.c.l.b16 %v991
    %v1031 = vunpack.c.l.b16 %v992
    %v1032 = vunpack.c.l.b16 %v993
    %v1033 = vunpack.c.l.b16 %v994
    %v1034 = vunpack.c.l.b16 %v995
    %v1035 = vunpack.c.l.b16 %v996
    %v1036 = vunpack.c.l.b16 %v997
    %v1037 = vpack.c.b16 %v1022, %v1021
    %v1038 = vpack.c.b16 %v1024, %v1023
    %v1039 = vpack.c.b16 %v1026, %v1025
    %v1040 = vpack.c.b16 %v1028, %v1027
    %v1041 = vpack.c.b16 %v1030, %v1029
    %v1042 = vpack.c.b16 %v1032, %v1031
    %v1043 = vpack.c.b16 %v1034, %v1033
    %v1044 = vpack.c.b16 %v1036, %v1035
    %1053 = vmatprep.subr.bf16.mxu0 0
    %1054 = vmatpush1.bf16.msra.mxu0 %v1037
    %1055 = vmatprep.subr.bf16.mxu0 0
    %1056 = vmatpush1.bf16.msra.mxu0 %v1038
    %1057 = vmatprep.subr.bf16.mxu0 0
    %1058 = vmatpush1.bf16.msra.mxu0 %v1039
    %1059 = vmatprep.subr.bf16.mxu0 0
    %1060 = vmatpush1.bf16.msra.mxu0 %v1040
    %1061 = vmatprep.subr.bf16.mxu0 0
    %1062 = vmatpush1.bf16.msra.mxu0 %v1041
    %1063 = vmatprep.subr.bf16.mxu0 0
    %1064 = vmatpush1.bf16.msra.mxu0 %v1042
    %1065 = vmatprep.subr.bf16.mxu0 0
    %1066 = vmatpush1.bf16.msra.mxu0 %v1043
    %1067 = vmatprep.subr.bf16.mxu0 0
    %1068 = vmatpush1.bf16.msra.mxu0 %v1044
    %1069 = vmatprep.subr.bf16.mxu0 0
    %1070 = vmatpush1.bf16.msra.mxu0 0
    %1071 = vmatprep.subr.bf16.mxu0 0
    %1072 = vmatpush1.bf16.msra.mxu0 0
    %1073 = vmatprep.subr.bf16.mxu0 0
    %1074 = vmatpush1.bf16.msra.mxu0 0
    %1075 = vmatprep.subr.bf16.mxu0 0
    %1076 = vmatpush1.bf16.msra.mxu0 0
    %1077 = vmatprep.subr.bf16.mxu0 0
    %1078 = vmatpush1.bf16.msra.mxu0 0
    %1079 = vmatprep.subr.bf16.mxu0 0
    %1080 = vmatpush1.bf16.msra.mxu0 0
    %1081 = vmatprep.subr.bf16.mxu0 0
    %1082 = vmatpush1.bf16.msra.mxu0 0
    %1083 = vmatprep.subr.bf16.mxu0 0
    %1084 = vmatpush1.bf16.msra.mxu0 0
    %1085 = vmatprep.mubr.bf16.mxu0 0
    %1086 = vmatmul.mubr.bf16.gmra.mrb[0].mxu0 %v981
    %v1087 = vpop.f32.mrb[0].mxu0
    %v1088 = vadd.f32 %v1003, %v1087
    %v1089 = vpop.f32.mrb[0].mxu0
    %v1090 = vpop.f32.mrb[0].mxu0
    %v1091 = vadd.f32 %v1003, %v1090
    %v1092 = vpop.f32.mrb[0].mxu0
    %1093 = vdwg.mxu0
    %1094 = vmax.xlane.f32.xlu0 %v1088
    %v1095 = vpop.xlane.xlu0 %1094
    %1096 = vmax.xlane.f32.xlu0 %v1091
    %v1097 = vpop.xlane.xlu0 %1096
    %v1098 = vsub.f32 %v1088, %v1095
    %v1099 = vsub.f32 %v1091, %v1097
    %v1100 = vmul.f32 %v1098, 1.442695
    %v1101 = vpow.pop %v1100
    %v1102 = vmul.f32 %v1099, 1.442695
    %v1103 = vpow.pop %v1102
    %1104 = vadd.xlane.f32.xlu0 %v1101
    %v1105 = vpop.xlane.xlu0 %1104
    %1106 = vadd.xlane.f32.xlu0 %v1103
    %v1107 = vpop.xlane.xlu0 %1106
    %v1108 = vrcp.pop %v1105
    %v1109 = vmul.f32 %v1101, %v1108
    %v1110 = vrcp.pop %v1107
    %v1111 = vmul.f32 %v1103, %v1110
    %1112 = vst [vmem:[%s13] sm:$0xff] %v1109
    %1113 = vst [vmem:[%s13 + $0x8] sm:$0xff] %v1111
    // Predicated region
    $region78: #{_forward.1} parent=1 // pred_check
      _
    $region79: #{_forward.1} parent=1 // pred_check_branch
      %1115 = sbr.rel (0) target = $region81
    $region80: #{_forward.1} parent=1 // pred_region
      _
    $region81: #{_forward.1} parent=1 // pred_fallthru
      _
    // Predicated region
    $region82: #{_forward.1} parent=1 // pred_check
      _
    $region83: #{_forward.1} parent=1 // pred_check_branch
      %1117 = sbr.rel (0) target = $region85
    $region84: #{_forward.1} parent=1 // pred_region
      _
    $region85: #{_forward.1} parent=1 // pred_fallthru
      _
    %1118 = vsyncpa [#allocation3], 1
    %1119 = vsyncpa [#allocation5], 1
    %1120 = vsyncpa [#allocation8], 1
    %1121 = vsyncpa [#allocation11], 1

</llo_original>
